<compile_context>
chip_gen: v6e
topology: v6e:2x2x1
jax: 0.10.0
libtpu: 0.0.40
codegen_flags: <defaults>
</compile_context>

<pallas_src>
import functools

import jax
import jax.numpy as jnp
import numpy as np
from jax.experimental import pallas as pl
from jax.experimental.pallas import tpu as pltpu

EPS = 1e-5  # PyTorch BatchNorm default


# --------------------------------------------------------------------------
# The single fused Pallas kernel:  h_{l+1} = act(h_l @ W_l + b_l)  for all layers
# --------------------------------------------------------------------------
def _fused_decoder_kernel(*refs, num_layers, matmul_dtype, approx_sigmoid):
    x_ref = refs[0]
    o_ref = refs[-1]
    h = x_ref[...]                                   # (TM, D0) f32
    for l in range(num_layers):
        w_ref = refs[1 + 2 * l]
        b_ref = refs[2 + 2 * l]
        acc = jnp.dot(h.astype(matmul_dtype), w_ref[...],
                      preferred_element_type=jnp.float32)
        acc = acc + b_ref[...]                       # bias / folded BN in f32
        if l + 1 < num_layers:
            h = jnp.maximum(acc, 0.0)                # ReLU (VPU)
        else:
            # sigmoid: exp on the EUP; reciprocal on the EUP when approx=True.
            h = pl.reciprocal(1.0 + jnp.exp(-acc), approx=approx_sigmoid)
    o_ref[...] = h.astype(o_ref.dtype)


def _decoder_pallas_call(x, layers, *, approx_sigmoid):
    n, d0 = x.shape
    num_layers = len(layers)
    d_last = layers[-1][0].shape[1]

    # Batch tiling: single block for small N, else 512-row tiles on a parallel grid.
    if n <= 512:
        tm, n_pad = n, n
    else:
        tm = 512
        n_pad = ((n + tm - 1) // tm) * tm
    xp = jnp.pad(x, ((0, n_pad - n), (0, 0))) if n_pad != n else x

    in_specs = [pl.BlockSpec((tm, d0), lambda i: (i, 0))]
    args = [xp]
    for w, b in layers:
        din, dout = w.shape
        in_specs.append(pl.BlockSpec((din, dout), lambda i: (0, 0)))   # broadcast
        in_specs.append(pl.BlockSpec((1, dout), lambda i: (0, 0)))
        args.append(w)
        args.append(b)
    out_specs = pl.BlockSpec((tm, d_last), lambda i: (i, 0))

    # VMEM budget: weights (resident) + double-buffered activations; only raise the
    # limit if we actually exceed the default scoped VMEM.
    weight_bytes = int(sum(w.size * w.dtype.itemsize + b.size * b.dtype.itemsize
                           for w, b in layers))
    act_bytes = int(tm * max([d0] + [w.shape[1] for w, _ in layers]) * 4)
    needed = 2 * weight_bytes + 8 * act_bytes + (2 << 20)
    vmem_limit = min(needed, 100 << 20) if needed > (32 << 20) else None

    kernel = functools.partial(
        _fused_decoder_kernel,
        num_layers=num_layers,
        matmul_dtype=layers[0][0].dtype,
        approx_sigmoid=approx_sigmoid,
    )
    out = pl.pallas_call(
        kernel,
        out_shape=jax.ShapeDtypeStruct((n_pad, d_last), jnp.float32),
        grid=(n_pad // tm,),
        in_specs=in_specs,
        out_specs=out_specs,
        compiler_params=pltpu.CompilerParams(
            dimension_semantics=("parallel",),
            vmem_limit_bytes=vmem_limit,
        ),
    )(*args)
    return out[:n] if n_pad != n else out


def decoder_forward(x, prepped):
    flat = _decoder_pallas_call(x, prepped["layers"],
                                approx_sigmoid=prepped["approx_sigmoid"])
    c, h, w = prepped["out_chw"]
    return flat.reshape(x.shape[0], c, h, w)     # free row-major reshape to NCHW


# --------------------------------------------------------------------------
# One-time parameter lowering (host-side): fold BN, expand ConvTranspose2d(2,2)
# --------------------------------------------------------------------------
def _bn_fold_np(bn):
    gamma = np.asarray(bn["gamma"], np.float32)
    beta = np.asarray(bn["beta"], np.float32)
    rm = np.asarray(bn["rm"], np.float32)
    rv = np.asarray(bn["rv"], np.float32)
    scale = gamma / np.sqrt(rv + EPS)
    shift = beta - rm * scale
    return scale, shift


def _expand_convT_np(w, b, h, wd):
    """ConvTranspose2d(Cin,Cout,k=2,s=2) on a (Cin,h,wd) map, as a dense matrix on
    the per-sample CHW-flattened vector.  Output column order = (o, y_out, x_out)."""
    cin, cout = w.shape[:2]
    ho, wo = 2 * h, 2 * wd
    e = np.zeros((cin, h, wd, cout, ho, wo), np.float32)
    for p in range(2):
        for q in range(2):
            for y in range(h):
                for x in range(wd):
                    e[:, y, x, :, 2 * y + p, 2 * x + q] = w[:, :, p, q]
    e = e.reshape(cin * h * wd, cout * ho * wo)
    be = np.repeat(b, ho * wo)
    return e, be


def prepare_decoder(params, connector_shape, use_bf16=False, approx_sigmoid=None):
    """Lower every layer to a single folded (W, b) matmul.  Done once at build time."""
    if approx_sigmoid is None:
        approx_sigmoid = use_bf16
    mm_dtype = jnp.bfloat16 if use_bf16 else jnp.float32

    layers = []
    for lin, bn in params["mlp"]:
        scale, shift = _bn_fold_np(bn)
        w = np.asarray(lin["w"], np.float32).T * scale[None, :]
        b = np.asarray(lin["b"], np.float32) * scale + shift
        layers.append((w, b))

    _, h, wd = connector_shape
    for conv, bn in params["conv_blocks"]:
        we, be = _expand_convT_np(np.asarray(conv["w"], np.float32),
                                  np.asarray(conv["b"], np.float32), h, wd)
        scale, shift = _bn_fold_np(bn)
        ho_wo = 4 * h * wd
        col_scale = np.repeat(scale, ho_wo)
        col_shift = np.repeat(shift, ho_wo)
        layers.append((we * col_scale[None, :], be * col_scale + col_shift))
        h, wd = 2 * h, 2 * wd

    fin = params["final_conv"]
    we, be = _expand_convT_np(np.asarray(fin["w"], np.float32),
                              np.asarray(fin["b"], np.float32), h, wd)
    layers.append((we, be))
    h, wd = 2 * h, 2 * wd

    dev_layers = [(jnp.asarray(w, dtype=mm_dtype),
                   jnp.asarray(b, dtype=jnp.float32).reshape(1, -1))
                  for w, b in layers]
    return {"layers": dev_layers, "out_chw": (1, h, wd),
            "approx_sigmoid": approx_sigmoid}


# --------------------------------------------------------------------------
# Deterministic parameter initialization (shapes match the PyTorch module)
# --------------------------------------------------------------------------
def _uniform(key, shape, bound):
    return jax.random.uniform(key, shape, jnp.float32, -bound, bound)


def _init_bn(key, n):
    k1, k2, k3, k4 = jax.random.split(key, 4)
    return {
        "gamma": 1.0 + 0.1 * jax.random.normal(k1, (n,), jnp.float32),
        "beta": 0.1 * jax.random.normal(k2, (n,), jnp.float32),
        "rm": 0.1 * jax.random.normal(k3, (n,), jnp.float32),
        "rv": jax.random.uniform(k4, (n,), jnp.float32, 0.5, 1.5),
    }


def init_params(key, conv_features_sizes, linear_layer_sizes, latent_size, connector_shape):
    mlp_dims = [latent_size] + list(linear_layer_sizes) + [int(np.prod(connector_shape))]
    params = {"mlp": [], "conv_blocks": [], "final_conv": None}
    for in_f, out_f in zip(mlp_dims[:-1], mlp_dims[1:]):
        key, kw, kb, kbn = jax.random.split(key, 4)
        bound = 1.0 / np.sqrt(in_f)
        lin = {"w": _uniform(kw, (out_f, in_f), bound), "b": _uniform(kb, (out_f,), bound)}
        params["mlp"].append((lin, _init_bn(kbn, out_f)))
    for in_f, out_f in zip(conv_features_sizes[:-1], conv_features_sizes[1:]):
        key, kw, kb, kbn = jax.random.split(key, 4)
        bound = 1.0 / np.sqrt(in_f * 4)
        conv = {"w": _uniform(kw, (in_f, out_f, 2, 2), bound), "b": _uniform(kb, (out_f,), bound)}
        params["conv_blocks"].append((conv, _init_bn(kbn, out_f)))
    key, kw, kb = jax.random.split(key, 3)
    cin = conv_features_sizes[-1]
    bound = 1.0 / np.sqrt(cin * 4)
    params["final_conv"] = {"w": _uniform(kw, (cin, 1, 2, 2), bound), "b": _uniform(kb, (1,), bound)}
    return params


# --------------------------------------------------------------------------
# Pure-jnp reference (independent formulation) for validation
# --------------------------------------------------------------------------
def _ref_convT(x, w, b):
    N, C, H, W = x.shape
    Cin, Cout, _, _ = w.shape
    y = jnp.einsum("nchw,copq->nohpwq", x, w).reshape(N, Cout, 2 * H, 2 * W)
    return y + b[None, :, None, None]


def ref_forward(params, x, connector_shape):
    h = x
    for lin, bn in params["mlp"]:
        h = h @ lin["w"].T + lin["b"]
        h = (h - bn["rm"]) / jnp.sqrt(bn["rv"] + EPS) * bn["gamma"] + bn["beta"]
        h = jnp.maximum(h, 0.0)
    h = h.reshape(h.shape[0], *connector_shape)
    for conv, bn in params["conv_blocks"]:
        h = _ref_convT(h, conv["w"], conv["b"])
        h = ((h - bn["rm"][None, :, None, None])
             / jnp.sqrt(bn["rv"][None, :, None, None] + EPS)
             * bn["gamma"][None, :, None, None] + bn["beta"][None, :, None, None])
        h = jnp.maximum(h, 0.0)
    fin = params["final_conv"]
    h = _ref_convT(h, fin["w"], fin["b"])
    return 1.0 / (1.0 + jnp.exp(-h))


# --------------------------------------------------------------------------
if __name__ == "__main__":
    # Small config: latent=32, linear sizes [64, 128], connector (8, 4, 4),
    # conv feature sizes [8, 4] -> output (N, 1, 16, 16).
    latent_size = 32
    linear_layer_sizes = [64, 128]
    connector_shape = (8, 4, 4)
    conv_features_sizes = [8, 4]
    batch = 2

    key = jax.random.PRNGKey(0)
    key, kx, kp = jax.random.split(key, 3)
    x = jax.random.normal(kx, (batch, latent_size), jnp.float32)
    params = init_params(kp, conv_features_sizes, linear_layer_sizes, latent_size, connector_shape)

    ref = jax.block_until_ready(ref_forward(params, x, connector_shape))

    # f32 path (exact w.r.t. the reference)
    prepped = prepare_decoder(params, connector_shape, use_bf16=False)
    fwd = jax.jit(functools.partial(decoder_forward, prepped=prepped))
    out = jax.block_until_ready(fwd(x))
    assert out.shape == (batch, 1, 16, 16), out.shape
    np.testing.assert_allclose(np.asarray(out), np.asarray(ref), rtol=1e-5, atol=2e-5)

    # bf16 MXU path (v6e/v7x oriented): f32 accumulation, loose tolerance.
    prepped_bf16 = prepare_decoder(params, connector_shape, use_bf16=True)
    fwd_bf16 = jax.jit(functools.partial(decoder_forward, prepped=prepped_bf16))
    out_bf16 = jax.block_until_ready(fwd_bf16(x))
    np.testing.assert_allclose(np.asarray(out_bf16), np.asarray(ref), rtol=0.0, atol=0.1)

    print("KERNEL_OK")
</pallas_src>

<mosaic_0001>
module attributes {stable_mosaic.version = 11 : i64} {
  func.func @_fused_decoder_kernel(%arg0: i32, %arg1: memref<2x32xf32, #tpu.memory_space<vmem>>, %arg2: memref<32x64xf32, #tpu.memory_space<vmem>>, %arg3: memref<1x64xf32, #tpu.memory_space<vmem>>, %arg4: memref<64x128xf32, #tpu.memory_space<vmem>>, %arg5: memref<1x128xf32, #tpu.memory_space<vmem>>, %arg6: memref<128x128xf32, #tpu.memory_space<vmem>>, %arg7: memref<1x128xf32, #tpu.memory_space<vmem>>, %arg8: memref<128x256xf32, #tpu.memory_space<vmem>>, %arg9: memref<1x256xf32, #tpu.memory_space<vmem>>, %arg10: memref<256x256xf32, #tpu.memory_space<vmem>>, %arg11: memref<1x256xf32, #tpu.memory_space<vmem>>, %arg12: memref<2x256xf32, #tpu.memory_space<vmem>>) attributes {dimension_semantics = [#tpu.dimension_semantics<parallel>], iteration_bounds = array<i64: 1>, scalar_prefetch = 0 : i64, scratch_operands = 0 : i64, tpu.core_type = #tpu.core_type<tc>, window_params = [{transform_indices = @transform_0, window_bounds = array<i64: 2, 32>}, {pipeline_mode = #tpu.pipeline_mode<synchronous>, transform_indices = @transform_1, window_bounds = array<i64: 32, 64>}, {pipeline_mode = #tpu.pipeline_mode<synchronous>, transform_indices = @transform_2, window_bounds = array<i64: 1, 64>}, {pipeline_mode = #tpu.pipeline_mode<synchronous>, transform_indices = @transform_3, window_bounds = array<i64: 64, 128>}, {pipeline_mode = #tpu.pipeline_mode<synchronous>, transform_indices = @transform_4, window_bounds = array<i64: 1, 128>}, {pipeline_mode = #tpu.pipeline_mode<synchronous>, transform_indices = @transform_5, window_bounds = array<i64: 128, 128>}, {pipeline_mode = #tpu.pipeline_mode<synchronous>, transform_indices = @transform_6, window_bounds = array<i64: 1, 128>}, {pipeline_mode = #tpu.pipeline_mode<synchronous>, transform_indices = @transform_7, window_bounds = array<i64: 128, 256>}, {pipeline_mode = #tpu.pipeline_mode<synchronous>, transform_indices = @transform_8, window_bounds = array<i64: 1, 256>}, {pipeline_mode = #tpu.pipeline_mode<synchronous>, transform_indices = @transform_9, window_bounds = array<i64: 256, 256>}, {pipeline_mode = #tpu.pipeline_mode<synchronous>, transform_indices = @transform_10, window_bounds = array<i64: 1, 256>}, {transform_indices = @transform_11, window_bounds = array<i64: 2, 256>}]} {
    %c0 = arith.constant 0 : index
    %c0_0 = arith.constant 0 : index
    %0 = vector.load %arg1[%c0, %c0_0] : memref<2x32xf32, #tpu.memory_space<vmem>>, vector<2x32xf32>
    %c0_1 = arith.constant 0 : index
    %c0_2 = arith.constant 0 : index
    %1 = vector.load %arg2[%c0_1, %c0_2] : memref<32x64xf32, #tpu.memory_space<vmem>>, vector<32x64xf32>
    %cst = arith.constant dense<0.000000e+00> : vector<2x64xf32>
    %2 = tpu.matmul %0, %1, %cst {dimension_numbers = #tpu.dot_dimension_numbers<[1], [0], [0], [1], [0, 0, 1, 1], [], []>} : vector<2x32xf32>, vector<32x64xf32>, vector<2x64xf32> -> vector<2x64xf32>
    %c0_3 = arith.constant 0 : index
    %c0_4 = arith.constant 0 : index
    %3 = vector.load %arg3[%c0_3, %c0_4] : memref<1x64xf32, #tpu.memory_space<vmem>>, vector<1x64xf32>
    %4 = vector.broadcast %3 : vector<1x64xf32> to vector<2x64xf32>
    %5 = arith.addf %2, %4 : vector<2x64xf32>
    %cst_5 = arith.constant 0.000000e+00 : f32
    %6 = vector.broadcast %cst_5 : f32 to vector<2x64xf32>
    %7 = arith.maximumf %5, %6 : vector<2x64xf32>
    %c0_6 = arith.constant 0 : index
    %c0_7 = arith.constant 0 : index
    %8 = vector.load %arg4[%c0_6, %c0_7] : memref<64x128xf32, #tpu.memory_space<vmem>>, vector<64x128xf32>
    %cst_8 = arith.constant dense<0.000000e+00> : vector<2x128xf32>
    %9 = tpu.matmul %7, %8, %cst_8 {dimension_numbers = #tpu.dot_dimension_numbers<[1], [0], [0], [1], [0, 0, 1, 1], [], []>} : vector<2x64xf32>, vector<64x128xf32>, vector<2x128xf32> -> vector<2x128xf32>
    %c0_9 = arith.constant 0 : index
    %c0_10 = arith.constant 0 : index
    %10 = vector.load %arg5[%c0_9, %c0_10] : memref<1x128xf32, #tpu.memory_space<vmem>>, vector<1x128xf32>
    %11 = vector.broadcast %10 : vector<1x128xf32> to vector<2x128xf32>
    %12 = arith.addf %9, %11 : vector<2x128xf32>
    %cst_11 = arith.constant 0.000000e+00 : f32
    %13 = vector.broadcast %cst_11 : f32 to vector<2x128xf32>
    %14 = arith.maximumf %12, %13 : vector<2x128xf32>
    %c0_12 = arith.constant 0 : index
    %c0_13 = arith.constant 0 : index
    %15 = vector.load %arg6[%c0_12, %c0_13] : memref<128x128xf32, #tpu.memory_space<vmem>>, vector<128x128xf32>
    %cst_14 = arith.constant dense<0.000000e+00> : vector<2x128xf32>
    %16 = tpu.matmul %14, %15, %cst_14 {dimension_numbers = #tpu.dot_dimension_numbers<[1], [0], [0], [1], [0, 0, 1, 1], [], []>} : vector<2x128xf32>, vector<128x128xf32>, vector<2x128xf32> -> vector<2x128xf32>
    %c0_15 = arith.constant 0 : index
    %c0_16 = arith.constant 0 : index
    %17 = vector.load %arg7[%c0_15, %c0_16] : memref<1x128xf32, #tpu.memory_space<vmem>>, vector<1x128xf32>
    %18 = vector.broadcast %17 : vector<1x128xf32> to vector<2x128xf32>
    %19 = arith.addf %16, %18 : vector<2x128xf32>
    %cst_17 = arith.constant 0.000000e+00 : f32
    %20 = vector.broadcast %cst_17 : f32 to vector<2x128xf32>
    %21 = arith.maximumf %19, %20 : vector<2x128xf32>
    %c0_18 = arith.constant 0 : index
    %c0_19 = arith.constant 0 : index
    %22 = vector.load %arg8[%c0_18, %c0_19] : memref<128x256xf32, #tpu.memory_space<vmem>>, vector<128x256xf32>
    %cst_20 = arith.constant dense<0.000000e+00> : vector<2x256xf32>
    %23 = tpu.matmul %21, %22, %cst_20 {dimension_numbers = #tpu.dot_dimension_numbers<[1], [0], [0], [1], [0, 0, 1, 1], [], []>} : vector<2x128xf32>, vector<128x256xf32>, vector<2x256xf32> -> vector<2x256xf32>
    %c0_21 = arith.constant 0 : index
    %c0_22 = arith.constant 0 : index
    %24 = vector.load %arg9[%c0_21, %c0_22] : memref<1x256xf32, #tpu.memory_space<vmem>>, vector<1x256xf32>
    %25 = vector.broadcast %24 : vector<1x256xf32> to vector<2x256xf32>
    %26 = arith.addf %23, %25 : vector<2x256xf32>
    %cst_23 = arith.constant 0.000000e+00 : f32
    %27 = vector.broadcast %cst_23 : f32 to vector<2x256xf32>
    %28 = arith.maximumf %26, %27 : vector<2x256xf32>
    %c0_24 = arith.constant 0 : index
    %c0_25 = arith.constant 0 : index
    %29 = vector.load %arg10[%c0_24, %c0_25] : memref<256x256xf32, #tpu.memory_space<vmem>>, vector<256x256xf32>
    %cst_26 = arith.constant dense<0.000000e+00> : vector<2x256xf32>
    %30 = tpu.matmul %28, %29, %cst_26 {dimension_numbers = #tpu.dot_dimension_numbers<[1], [0], [0], [1], [0, 0, 1, 1], [], []>} : vector<2x256xf32>, vector<256x256xf32>, vector<2x256xf32> -> vector<2x256xf32>
    %c0_27 = arith.constant 0 : index
    %c0_28 = arith.constant 0 : index
    %31 = vector.load %arg11[%c0_27, %c0_28] : memref<1x256xf32, #tpu.memory_space<vmem>>, vector<1x256xf32>
    %32 = vector.broadcast %31 : vector<1x256xf32> to vector<2x256xf32>
    %33 = arith.addf %30, %32 : vector<2x256xf32>
    %cst_29 = arith.constant 0.000000e+00 : f32
    %34 = vector.broadcast %cst_29 : f32 to vector<2x256xf32>
    %35 = arith.subf %34, %33 : vector<2x256xf32>
    %36 = math.exp %35 : vector<2x256xf32>
    %cst_30 = arith.constant 1.000000e+00 : f32
    %37 = vector.broadcast %cst_30 : f32 to vector<2x256xf32>
    %38 = arith.addf %37, %36 : vector<2x256xf32>
    %39 = tpu.reciprocal %38 : vector<2x256xf32> -> vector<2x256xf32>
    %c0_31 = arith.constant 0 : index
    %c0_32 = arith.constant 0 : index
    %40 = vector.load %arg12[%c0_31, %c0_32] : memref<2x256xf32, #tpu.memory_space<vmem>>, vector<2x256xf32>
    tpu.vector_store %arg12[%c0_31, %c0_32], %39 {strides = array<i32>} : memref<2x256xf32, #tpu.memory_space<vmem>>, vector<2x256xf32>,
    return
  }
  func.func @transform_0(%arg0: i32) -> (i32, i32) {
    %c0_i32 = arith.constant 0 : i32
    %c0_i32_0 = arith.constant 0 : i32
    return %arg0, %c0_i32 : i32, i32
  }
  func.func @transform_1(%arg0: i32) -> (i32, i32) {
    %c0_i32 = arith.constant 0 : i32
    %c0_i32_0 = arith.constant 0 : i32
    %c0_i32_1 = arith.constant 0 : i32
    return %c0_i32, %c0_i32_0 : i32, i32
  }
  func.func @transform_2(%arg0: i32) -> (i32, i32) {
    %c0_i32 = arith.constant 0 : i32
    %c0_i32_0 = arith.constant 0 : i32
    %c0_i32_1 = arith.constant 0 : i32
    return %c0_i32, %c0_i32_0 : i32, i32
  }
  func.func @transform_3(%arg0: i32) -> (i32, i32) {
    %c0_i32 = arith.constant 0 : i32
    %c0_i32_0 = arith.constant 0 : i32
    %c0_i32_1 = arith.constant 0 : i32
    return %c0_i32, %c0_i32_0 : i32, i32
  }
  func.func @transform_4(%arg0: i32) -> (i32, i32) {
    %c0_i32 = arith.constant 0 : i32
    %c0_i32_0 = arith.constant 0 : i32
    %c0_i32_1 = arith.constant 0 : i32
    return %c0_i32, %c0_i32_0 : i32, i32
  }
  func.func @transform_5(%arg0: i32) -> (i32, i32) {
    %c0_i32 = arith.constant 0 : i32
    %c0_i32_0 = arith.constant 0 : i32
    %c0_i32_1 = arith.constant 0 : i32
    return %c0_i32, %c0_i32_0 : i32, i32
  }
  func.func @transform_6(%arg0: i32) -> (i32, i32) {
    %c0_i32 = arith.constant 0 : i32
    %c0_i32_0 = arith.constant 0 : i32
    %c0_i32_1 = arith.constant 0 : i32
    return %c0_i32, %c0_i32_0 : i32, i32
  }
  func.func @transform_7(%arg0: i32) -> (i32, i32) {
    %c0_i32 = arith.constant 0 : i32
    %c0_i32_0 = arith.constant 0 : i32
    %c0_i32_1 = arith.constant 0 : i32
    return %c0_i32, %c0_i32_0 : i32, i32
  }
  func.func @transform_8(%arg0: i32) -> (i32, i32) {
    %c0_i32 = arith.constant 0 : i32
    %c0_i32_0 = arith.constant 0 : i32
    %c0_i32_1 = arith.constant 0 : i32
    return %c0_i32, %c0_i32_0 : i32, i32
  }
  func.func @transform_9(%arg0: i32) -> (i32, i32) {
    %c0_i32 = arith.constant 0 : i32
    %c0_i32_0 = arith.constant 0 : i32
    %c0_i32_1 = arith.constant 0 : i32
    return %c0_i32, %c0_i32_0 : i32, i32
  }
  func.func @transform_10(%arg0: i32) -> (i32, i32) {
    %c0_i32 = arith.constant 0 : i32
    %c0_i32_0 = arith.constant 0 : i32
    %c0_i32_1 = arith.constant 0 : i32
    return %c0_i32, %c0_i32_0 : i32, i32
  }
  func.func @transform_11(%arg0: i32) -> (i32, i32) {
    %c0_i32 = arith.constant 0 : i32
    %c0_i32_0 = arith.constant 0 : i32
    return %arg0, %c0_i32 : i32, i32
  }
}

</mosaic_0001>

<llo_original>
// kernel: decoder_forward.1
$region0: #{decoder_forward.1}
  #allocation0 [shape = 'u32[]', space=smem, size = 0x4, offset = 0x4, fixed_abs, tag = 'smem constant byte address 0x4 - core index']
  #allocation1 [shape = 'u32[144,128]{1,0:T(1,128)}', space=vmem, size = 0x12000, scoped, tag = 'internal scratch']
  %s0 = inlined_call_operand.vmem [shape: f32[2,32], index: 0, kind: input, shape index: {}]
  %s1 = inlined_call_operand.hbm [shape: f32[32,64], index: 1, kind: input, shape index: {}]
  %s2 = inlined_call_operand.vmem [shape: f32[1,64], index: 2, kind: input, shape index: {}]
  %s3 = inlined_call_operand.hbm [shape: f32[64,128], index: 3, kind: input, shape index: {}]
  %s4 = inlined_call_operand.vmem [shape: f32[1,128], index: 4, kind: input, shape index: {}]
  %s5 = inlined_call_operand.hbm [shape: f32[128,128], index: 5, kind: input, shape index: {}]
  %s6 = inlined_call_operand.vmem [shape: f32[1,128], index: 6, kind: input, shape index: {}]
  %s7 = inlined_call_operand.hbm [shape: f32[128,256], index: 7, kind: input, shape index: {}]
  %s8 = inlined_call_operand.vmem [shape: f32[1,256], index: 8, kind: input, shape index: {}]
  %s9 = inlined_call_operand.hbm [shape: f32[256,256], index: 9, kind: input, shape index: {}]
  %s10 = inlined_call_operand.vmem [shape: f32[1,256], index: 10, kind: input, shape index: {}]
  %s11 = inlined_call_operand.vmem [shape: f32[2,256], index: 11, kind: output, shape index: {}]
  %s12 = sld [smem:[#allocation0]]
  $region74: #{decoder_forward.1} parent=0
    _
  %s14 = ssub.s32 1, %s12
  %s15 = scalar_select 0, %s14, %s12
  $region1: #{decoder_forward.1} parent=0
    #allocation2 [shape = 'u8[16384]{0}', space=vmem, size = 0x4000, scoped, tag = 'input window, operand 1, single buffered']
    #allocation3 [shape = 's32[1]{0}', space=sflag, size = 0x4, scoped, tag = 'scoped memory for decoder_forward.1']
    #allocation4 [shape = 'u8[32768]{0}', space=vmem, size = 0x8000, scoped, tag = 'input window, operand 3, single buffered']
    #allocation5 [shape = 's32[1]{0}', space=sflag, size = 0x4, scoped, tag = 'scoped memory for decoder_forward.1']
    #allocation6 [shape = 'u8[65536]{0}', space=vmem, size = 0x10000, scoped, tag = 'input window, operand 5, single buffered']
    #allocation7 [shape = 'u8[131072]{0}', space=vmem, size = 0x20000, scoped, tag = 'input window, operand 7, single buffered']
    #allocation8 [shape = 's32[1]{0}', space=sflag, size = 0x4, scoped, tag = 'scoped memory for decoder_forward.1']
    #allocation9 [shape = 'u8[262144]{0}', space=vmem, size = 0x40000, scoped, tag = 'input window, operand 9, single buffered']
    %16 = vsyncpa [#allocation3], 0
    %17 = vsyncpa [#allocation5], 0
    %18 = vsyncpa [#allocation8], 0
    // Predicated region
    $region2: #{decoder_forward.1} parent=1 // pred_check
      _
    $region3: #{decoder_forward.1} parent=1 // pred_check_branch
      %20 = sbr.rel (0) target = $region5
    $region4: #{decoder_forward.1} parent=1 // pred_region
      _
    $region5: #{decoder_forward.1} parent=1 // pred_fallthru
      _
    // Predicated region
    $region6: #{decoder_forward.1} parent=1 // pred_check
      _
    $region7: #{decoder_forward.1} parent=1 // pred_check_branch
      %22 = sbr.rel (0) target = $region9
    $region8: #{decoder_forward.1} parent=1 // pred_region
      %s24 = ssub.s32 512, 512
      %25 = vsyncadd [#allocation3], %s24
      %s26 = sshll.u32 [#allocation2], 4
      %s27 = int_to_ptr.vmem [resolvable:$true] %s26
      %32 = dma.hbm_to_vmem [thread:$0]  %s1, 512, %s27, [#allocation3], 128, 128, 8
    $region9: #{decoder_forward.1} parent=1 // pred_fallthru
      _
    // Predicated region
    $region10: #{decoder_forward.1} parent=1 // pred_check
      _
    $region11: #{decoder_forward.1} parent=1 // pred_check_branch
      %34 = sbr.rel (0) target = $region13
    $region12: #{decoder_forward.1} parent=1 // pred_region
      _
    $region13: #{decoder_forward.1} parent=1 // pred_fallthru
      _
    // Predicated region
    $region14: #{decoder_forward.1} parent=1 // pred_check
      _
    $region15: #{decoder_forward.1} parent=1 // pred_check_branch
      %36 = sbr.rel (0) target = $region17
    $region16: #{decoder_forward.1} parent=1 // pred_region
      %s38 = ssub.s32 1024, 1024
      %39 = vsyncadd [#allocation5], %s38
      %s40 = sshll.u32 [#allocation4], 4
      %s41 = int_to_ptr.vmem [resolvable:$true] %s40
      %46 = dma.hbm_to_vmem [thread:$0]  %s3, 1024, %s41, [#allocation5], 128, 128, 8
    $region17: #{decoder_forward.1} parent=1 // pred_fallthru
      _
    // Predicated region
    $region18: #{decoder_forward.1} parent=1 // pred_check
      _
    $region19: #{decoder_forward.1} parent=1 // pred_check_branch
      %48 = sbr.rel (0) target = $region21
    $region20: #{decoder_forward.1} parent=1 // pred_region
      _
    $region21: #{decoder_forward.1} parent=1 // pred_fallthru
      _
    // Predicated region
    $region22: #{decoder_forward.1} parent=1 // pred_check
      _
    $region23: #{decoder_forward.1} parent=1 // pred_check_branch
      %50 = sbr.rel (0) target = $region25
    $region24: #{decoder_forward.1} parent=1 // pred_region
      %s52 = ssub.s32 2048, 2048
      %53 = vsyncadd [#allocation5], %s52
      %s54 = sshll.u32 [#allocation6], 4
      %s55 = int_to_ptr.vmem [resolvable:$true] %s54
      %60 = dma.hbm_to_vmem [thread:$0]  %s5, 2048, %s55, [#allocation5], 128, 128, 8
    $region25: #{decoder_forward.1} parent=1 // pred_fallthru
      _
    // Predicated region
    $region26: #{decoder_forward.1} parent=1 // pred_check
      _
    $region27: #{decoder_forward.1} parent=1 // pred_check_branch
      %62 = sbr.rel (0) target = $region29
    $region28: #{decoder_forward.1} parent=1 // pred_region
      _
    $region29: #{decoder_forward.1} parent=1 // pred_fallthru
      _
    // Predicated region
    $region30: #{decoder_forward.1} parent=1 // pred_check
      _
    $region31: #{decoder_forward.1} parent=1 // pred_check_branch
      %64 = sbr.rel (0) target = $region33
    $region32: #{decoder_forward.1} parent=1 // pred_region
      %s66 = ssub.s32 4096, 4096
      %67 = vsyncadd [#allocation8], %s66
      %s68 = sshll.u32 [#allocation7], 4
      %s69 = int_to_ptr.vmem [resolvable:$true] %s68
      %74 = dma.hbm_to_vmem [thread:$0]  %s7, 4096, %s69, [#allocation8], 256, 256, 16
    $region33: #{decoder_forward.1} parent=1 // pred_fallthru
      _
    // Predicated region
    $region34: #{decoder_forward.1} parent=1 // pred_check
      _
    $region35: #{decoder_forward.1} parent=1 // pred_check_branch
      %76 = sbr.rel (0) target = $region37
    $region36: #{decoder_forward.1} parent=1 // pred_region
      _
    $region37: #{decoder_forward.1} parent=1 // pred_fallthru
      _
    // Predicated region
    $region38: #{decoder_forward.1} parent=1 // pred_check
      _
    $region39: #{decoder_forward.1} parent=1 // pred_check_branch
      %78 = sbr.rel (0) target = $region41
    $region40: #{decoder_forward.1} parent=1 // pred_region
      %s80 = ssub.s32 8192, 8192
      %81 = vsyncadd [#allocation8], %s80
      %s82 = sshll.u32 [#allocation9], 4
      %s83 = int_to_ptr.vmem [resolvable:$true] %s82
      %88 = dma.hbm_to_vmem [thread:$0]  %s9, 8192, %s83, [#allocation8], 256, 256, 16
    $region41: #{decoder_forward.1} parent=1 // pred_fallthru
      _
    // Predicated region
    $region42: #{decoder_forward.1} parent=1 // pred_check
      _
    $region43: #{decoder_forward.1} parent=1 // pred_check_branch
      %90 = sbr.rel (0) target = $region45
    $region44: #{decoder_forward.1} parent=1 // pred_region
      _
    $region45: #{decoder_forward.1} parent=1 // pred_fallthru
      _
    // Predicated region
    $region46: #{decoder_forward.1} parent=1 // pred_check
      _
    $region47: #{decoder_forward.1} parent=1 // pred_check_branch
      %92 = sbr.rel (0) target = $region49
    $region48: #{decoder_forward.1} parent=1 // pred_region
      %93 = dma.done [#allocation3], 512
    $region49: #{decoder_forward.1} parent=1 // pred_fallthru
      _
    // Predicated region
    $region50: #{decoder_forward.1} parent=1 // pred_check
      _
    $region51: #{decoder_forward.1} parent=1 // pred_check_branch
      %95 = sbr.rel (0) target = $region53
    $region52: #{decoder_forward.1} parent=1 // pred_region
      %96 = dma.done [#allocation5], 1024
    $region53: #{decoder_forward.1} parent=1 // pred_fallthru
      _
    // Predicated region
    $region54: #{decoder_forward.1} parent=1 // pred_check
      _
    $region55: #{decoder_forward.1} parent=1 // pred_check_branch
      %98 = sbr.rel (0) target = $region57
    $region56: #{decoder_forward.1} parent=1 // pred_region
      %99 = dma.done [#allocation5], 2048
    $region57: #{decoder_forward.1} parent=1 // pred_fallthru
      _
    // Predicated region
    $region58: #{decoder_forward.1} parent=1 // pred_check
      _
    $region59: #{decoder_forward.1} parent=1 // pred_check_branch
      %101 = sbr.rel (0) target = $region61
    $region60: #{decoder_forward.1} parent=1 // pred_region
      %102 = dma.done [#allocation8], 4096
    $region61: #{decoder_forward.1} parent=1 // pred_fallthru
      _
    // Predicated region
    $region62: #{decoder_forward.1} parent=1 // pred_check
      _
    $region63: #{decoder_forward.1} parent=1 // pred_check_branch
      %104 = sbr.rel (0) target = $region65
    $region64: #{decoder_forward.1} parent=1 // pred_region
      %105 = dma.done [#allocation8], 8192
    $region65: #{decoder_forward.1} parent=1 // pred_fallthru
      _
    %v106 = vld [vmem:[%s0] sm:$0x3]
    %v107 = vld [vmem:[#allocation2] sm:$0xff]
    %v108 = vld [vmem:[#allocation2 + $0x8] sm:$0xff]
    %v109 = vld [vmem:[#allocation2 + $0x10] sm:$0xff]
    %v110 = vld [vmem:[#allocation2 + $0x18] sm:$0xff]
    %v111 = vld [vmem:[%s2] sm:$0x1]
    %v113 = vlaneseq
    %v114 = vshrl.u32 %v113, 7
    %v115 = vsub.s32 0, %v114
    %v116 = vrot.slane %v111, %v115
    %vm118 = vcmask 261120
    %v120 = vsel %vm118, %v106, 0
    %122 = vmatprep.subr.mxu0 0.0
    %123 = vmatpush1.msra.mxu0 0.0
    %124 = vmatprep.subr.mxu0 0.0
    %125 = vmatpush1.msra.mxu0 0.0
    %126 = vmatprep.subr.mxu0 0.0
    %127 = vmatpush1.msra.mxu0 0.0
    %128 = vmatprep.subr.mxu0 0.0
    %129 = vmatpush1.msra.mxu0 0.0
    %130 = vmatprep.subr.mxu0 0.0
    %131 = vmatpush1.msra.mxu0 0.0
    %132 = vmatprep.subr.mxu0 0.0
    %133 = vmatpush1.msra.mxu0 0.0
    %134 = vmatprep.subr.mxu0 0.0
    %135 = vmatpush1.msra.mxu0 0.0
    %136 = vmatprep.subr.mxu0 0.0
    %137 = vmatpush1.msra.mxu0 0.0
    %138 = vmatprep.subr.mxu0 0.0
    %139 = vmatpush1.msra.mxu0 0.0
    %140 = vmatprep.subr.mxu0 0.0
    %141 = vmatpush1.msra.mxu0 0.0
    %142 = vmatprep.subr.mxu0 0.0
    %143 = vmatpush1.msra.mxu0 0.0
    %144 = vmatprep.subr.mxu0 0.0
    %145 = vmatpush1.msra.mxu0 0.0
    %146 = vmatprep.subr.mxu0 0.0
    %147 = vmatpush1.msra.mxu0 %v110
    %148 = vmatprep.subr.mxu0 0.0
    %149 = vmatpush1.msra.mxu0 %v109
    %150 = vmatprep.subr.mxu0 0.0
    %151 = vmatpush1.msra.mxu0 %v108
    %152 = vmatprep.subr.mxu0 0.0
    %153 = vmatpush1.msra.mxu0 %v107
    %154 = vmatprep.subr.mxu0 0.0
    %155 = vmatpush2.msra.mxu0 0.0
    %156 = vmatprep.subr.mxu0 0.0
    %157 = vmatpush2.msra.mxu0 0.0
    %158 = vmatprep.subr.mxu0 0.0
    %159 = vmatpush2.msra.mxu0 0.0
    %160 = vmatprep.subr.mxu0 0.0
    %161 = vmatpush2.msra.mxu0 0.0
    %162 = vmatprep.subr.mxu0 0.0
    %163 = vmatpush2.msra.mxu0 0.0
    %164 = vmatprep.subr.mxu0 0.0
    %165 = vmatpush2.msra.mxu0 0.0
    %166 = vmatprep.subr.mxu0 0.0
    %167 = vmatpush2.msra.mxu0 0.0
    %168 = vmatprep.subr.mxu0 0.0
    %169 = vmatpush2.msra.mxu0 0.0
    %170 = vmatprep.subr.mxu0 0.0
    %171 = vmatpush2.msra.mxu0 0.0
    %172 = vmatprep.subr.mxu0 0.0
    %173 = vmatpush2.msra.mxu0 0.0
    %174 = vmatprep.subr.mxu0 0.0
    %175 = vmatpush2.msra.mxu0 0.0
    %176 = vmatprep.subr.mxu0 0.0
    %177 = vmatpush2.msra.mxu0 0.0
    %178 = vmatprep.subr.mxu0 0.0
    %179 = vmatpush2.msra.mxu0 0.0
    %180 = vmatprep.subr.mxu0 0.0
    %181 = vmatpush2.msra.mxu0 0.0
    %182 = vmatprep.subr.mxu0 0.0
    %183 = vmatpush2.msra.mxu0 0.0
    %184 = vmatprep.subr.mxu0 0.0
    %185 = vmatpush2.msra.mxu0 0.0
    %186 = vmatprep.mubr.f32.mxu0 0.0
    %187 = vmatmul.mubr.f32.gmra.mxu0 %v120
    %v188 = vpop.f32.mrf.mxu0
    %v189 = vadd.f32 %v116, %v188
    %v190 = vpop.f32.mrf.mxu0
    %191 = vdwg.mxu0
    %v192 = vmax.f32 %v189, 0.0
    %v193 = vld [vmem:[#allocation4] sm:$0xff]
    %v194 = vld [vmem:[#allocation4 + $0x8] sm:$0xff]
    %v195 = vld [vmem:[#allocation4 + $0x10] sm:$0xff]
    %v196 = vld [vmem:[#allocation4 + $0x18] sm:$0xff]
    %v197 = vld [vmem:[#allocation4 + $0x20] sm:$0xff]
    %v198 = vld [vmem:[#allocation4 + $0x28] sm:$0xff]
    %v199 = vld [vmem:[#allocation4 + $0x30] sm:$0xff]
    %v200 = vld [vmem:[#allocation4 + $0x38] sm:$0xff]
    %v201 = vld [vmem:[%s4] sm:$0x1]
    %v203 = vlaneseq
    %v204 = vshrl.u32 %v203, 7
    %v205 = vsub.s32 0, %v204
    %v206 = vrot.slane %v201, %v205
    %vm208 = vcmask 523264
    %v210 = vsel %vm208, %v192, 0
    %212 = vmatprep.subr.mxu0 0.0
    %213 = vmatpush1.msra.mxu0 0.0
    %214 = vmatprep.subr.mxu0 0.0
    %215 = vmatpush1.msra.mxu0 0.0
    %216 = vmatprep.subr.mxu0 0.0
    %217 = vmatpush1.msra.mxu0 0.0
    %218 = vmatprep.subr.mxu0 0.0
    %219 = vmatpush1.msra.mxu0 0.0
    %220 = vmatprep.subr.mxu0 0.0
    %221 = vmatpush1.msra.mxu0 0.0
    %222 = vmatprep.subr.mxu0 0.0
    %223 = vmatpush1.msra.mxu0 0.0
    %224 = vmatprep.subr.mxu0 0.0
    %225 = vmatpush1.msra.mxu0 0.0
    %226 = vmatprep.subr.mxu0 0.0
    %227 = vmatpush1.msra.mxu0 0.0
    %228 = vmatprep.subr.mxu0 0.0
    %229 = vmatpush1.msra.mxu0 %v200
    %230 = vmatprep.subr.mxu0 0.0
    %231 = vmatpush1.msra.mxu0 %v199
    %232 = vmatprep.subr.mxu0 0.0
    %233 = vmatpush1.msra.mxu0 %v198
    %234 = vmatprep.subr.mxu0 0.0
    %235 = vmatpush1.msra.mxu0 %v197
    %236 = vmatprep.subr.mxu0 0.0
    %237 = vmatpush1.msra.mxu0 %v196
    %238 = vmatprep.subr.mxu0 0.0
    %239 = vmatpush1.msra.mxu0 %v195
    %240 = vmatprep.subr.mxu0 0.0
    %241 = vmatpush1.msra.mxu0 %v194
    %242 = vmatprep.subr.mxu0 0.0
    %243 = vmatpush1.msra.mxu0 %v193
    %244 = vmatprep.subr.mxu0 0.0
    %245 = vmatpush2.msra.mxu0 0.0
    %246 = vmatprep.subr.mxu0 0.0
    %247 = vmatpush2.msra.mxu0 0.0
    %248 = vmatprep.subr.mxu0 0.0
    %249 = vmatpush2.msra.mxu0 0.0
    %250 = vmatprep.subr.mxu0 0.0
    %251 = vmatpush2.msra.mxu0 0.0
    %252 = vmatprep.subr.mxu0 0.0
    %253 = vmatpush2.msra.mxu0 0.0
    %254 = vmatprep.subr.mxu0 0.0
    %255 = vmatpush2.msra.mxu0 0.0
    %256 = vmatprep.subr.mxu0 0.0
    %257 = vmatpush2.msra.mxu0 0.0
    %258 = vmatprep.subr.mxu0 0.0
    %259 = vmatpush2.msra.mxu0 0.0
    %260 = vmatprep.subr.mxu0 0.0
    %261 = vmatpush2.msra.mxu0 0.0
    %262 = vmatprep.subr.mxu0 0.0
    %263 = vmatpush2.msra.mxu0 0.0
    %264 = vmatprep.subr.mxu0 0.0
    %265 = vmatpush2.msra.mxu0 0.0
    %266 = vmatprep.subr.mxu0 0.0
    %267 = vmatpush2.msra.mxu0 0.0
    %268 = vmatprep.subr.mxu0 0.0
    %269 = vmatpush2.msra.mxu0 0.0
    %270 = vmatprep.subr.mxu0 0.0
    %271 = vmatpush2.msra.mxu0 0.0
    %272 = vmatprep.subr.mxu0 0.0
    %273 = vmatpush2.msra.mxu0 0.0
    %274 = vmatprep.subr.mxu0 0.0
    %275 = vmatpush2.msra.mxu0 0.0
    %276 = vmatprep.mubr.f32.mxu0 0.0
    %277 = vmatmul.mubr.f32.gmra.mxu0 %v210
    %v278 = vpop.f32.mrf.mxu0
    %v279 = vadd.f32 %v206, %v278
    %v280 = vpop.f32.mrf.mxu0
    %281 = vdwg.mxu0
    %v282 = vmax.f32 %v279, 0.0
    %v283 = vld [vmem:[#allocation6] sm:$0xff]
    %v284 = vld [vmem:[#allocation6 + $0x8] sm:$0xff]
    %v285 = vld [vmem:[#allocation6 + $0x10] sm:$0xff]
    %v286 = vld [vmem:[#allocation6 + $0x18] sm:$0xff]
    %v287 = vld [vmem:[#allocation6 + $0x20] sm:$0xff]
    %v288 = vld [vmem:[#allocation6 + $0x28] sm:$0xff]
    %v289 = vld [vmem:[#allocation6 + $0x30] sm:$0xff]
    %v290 = vld [vmem:[#allocation6 + $0x38] sm:$0xff]
    %v291 = vld [vmem:[#allocation6 + $0x40] sm:$0xff]
    %v292 = vld [vmem:[#allocation6 + $0x48] sm:$0xff]
    %v293 = vld [vmem:[#allocation6 + $0x50] sm:$0xff]
    %v294 = vld [vmem:[#allocation6 + $0x58] sm:$0xff]
    %v295 = vld [vmem:[#allocation6 + $0x60] sm:$0xff]
    %v296 = vld [vmem:[#allocation6 + $0x68] sm:$0xff]
    %v297 = vld [vmem:[#allocation6 + $0x70] sm:$0xff]
    %v298 = vld [vmem:[#allocation6 + $0x78] sm:$0xff]
    %v299 = vld [vmem:[%s6] sm:$0x1]
    %v301 = vlaneseq
    %v302 = vshrl.u32 %v301, 7
    %v303 = vsub.s32 0, %v302
    %v304 = vrot.slane %v299, %v303
    %306 = vmatprep.subr.mxu0 0.0
    %307 = vmatpush1.msra.mxu0 %v298
    %308 = vmatprep.subr.mxu0 0.0
    %309 = vmatpush1.msra.mxu0 %v297
    %310 = vmatprep.subr.mxu0 0.0
    %311 = vmatpush1.msra.mxu0 %v296
    %312 = vmatprep.subr.mxu0 0.0
    %313 = vmatpush1.msra.mxu0 %v295
    %314 = vmatprep.subr.mxu0 0.0
    %315 = vmatpush1.msra.mxu0 %v294
    %316 = vmatprep.subr.mxu0 0.0
    %317 = vmatpush1.msra.mxu0 %v293
    %318 = vmatprep.subr.mxu0 0.0
    %319 = vmatpush1.msra.mxu0 %v292
    %320 = vmatprep.subr.mxu0 0.0
    %321 = vmatpush1.msra.mxu0 %v291
    %322 = vmatprep.subr.mxu0 0.0
    %323 = vmatpush1.msra.mxu0 %v290
    %324 = vmatprep.subr.mxu0 0.0
    %325 = vmatpush1.msra.mxu0 %v289
    %326 = vmatprep.subr.mxu0 0.0
    %327 = vmatpush1.msra.mxu0 %v288
    %328 = vmatprep.subr.mxu0 0.0
    %329 = vmatpush1.msra.mxu0 %v287
    %330 = vmatprep.subr.mxu0 0.0
    %331 = vmatpush1.msra.mxu0 %v286
    %332 = vmatprep.subr.mxu0 0.0
    %333 = vmatpush1.msra.mxu0 %v285
    %334 = vmatprep.subr.mxu0 0.0
    %335 = vmatpush1.msra.mxu0 %v284
    %336 = vmatprep.subr.mxu0 0.0
    %337 = vmatpush1.msra.mxu0 %v283
    %338 = vmatprep.subr.mxu0 0.0
    %339 = vmatpush2.msra.mxu0 0.0
    %340 = vmatprep.subr.mxu0 0.0
    %341 = vmatpush2.msra.mxu0 0.0
    %342 = vmatprep.subr.mxu0 0.0
    %343 = vmatpush2.msra.mxu0 0.0
    %344 = vmatprep.subr.mxu0 0.0
    %345 = vmatpush2.msra.mxu0 0.0
    %346 = vmatprep.subr.mxu0 0.0
    %347 = vmatpush2.msra.mxu0 0.0
    %348 = vmatprep.subr.mxu0 0.0
    %349 = vmatpush2.msra.mxu0 0.0
    %350 = vmatprep.subr.mxu0 0.0
    %351 = vmatpush2.msra.mxu0 0.0
    %352 = vmatprep.subr.mxu0 0.0
    %353 = vmatpush2.msra.mxu0 0.0
    %354 = vmatprep.subr.mxu0 0.0
    %355 = vmatpush2.msra.mxu0 0.0
    %356 = vmatprep.subr.mxu0 0.0
    %357 = vmatpush2.msra.mxu0 0.0
    %358 = vmatprep.subr.mxu0 0.0
    %359 = vmatpush2.msra.mxu0 0.0
    %360 = vmatprep.subr.mxu0 0.0
    %361 = vmatpush2.msra.mxu0 0.0
    %362 = vmatprep.subr.mxu0 0.0
    %363 = vmatpush2.msra.mxu0 0.0
    %364 = vmatprep.subr.mxu0 0.0
    %365 = vmatpush2.msra.mxu0 0.0
    %366 = vmatprep.subr.mxu0 0.0
    %367 = vmatpush2.msra.mxu0 0.0
    %368 = vmatprep.subr.mxu0 0.0
    %369 = vmatpush2.msra.mxu0 0.0
    %370 = vmatprep.mubr.f32.mxu0 0.0
    %371 = vmatmul.mubr.f32.gmra.mxu0 %v282
    %v372 = vpop.f32.mrf.mxu0
    %v373 = vadd.f32 %v304, %v372
    %v374 = vpop.f32.mrf.mxu0
    %375 = vdwg.mxu0
    %v376 = vmax.f32 %v373, 0.0
    %v377 = vld [vmem:[#allocation7] sm:$0xff]
    %v378 = vld [vmem:[#allocation7 + $0x8] sm:$0xff]
    %v379 = vld [vmem:[#allocation7 + $0x10] sm:$0xff]
    %v380 = vld [vmem:[#allocation7 + $0x18] sm:$0xff]
    %v381 = vld [vmem:[#allocation7 + $0x20] sm:$0xff]
    %v382 = vld [vmem:[#allocation7 + $0x28] sm:$0xff]
    %v383 = vld [vmem:[#allocation7 + $0x30] sm:$0xff]
    %v384 = vld [vmem:[#allocation7 + $0x38] sm:$0xff]
    %v385 = vld [vmem:[#allocation7 + $0x40] sm:$0xff]
    %v386 = vld [vmem:[#allocation7 + $0x48] sm:$0xff]
    %v387 = vld [vmem:[#allocation7 + $0x50] sm:$0xff]
    %v388 = vld [vmem:[#allocation7 + $0x58] sm:$0xff]
    %v389 = vld [vmem:[#allocation7 + $0x60] sm:$0xff]
    %v390 = vld [vmem:[#allocation7 + $0x68] sm:$0xff]
    %v391 = vld [vmem:[#allocation7 + $0x70] sm:$0xff]
    %v392 = vld [vmem:[#allocation7 + $0x78] sm:$0xff]
    %v393 = vld [vmem:[#allocation7 + $0x80] sm:$0xff]
    %v394 = vld [vmem:[#allocation7 + $0x88] sm:$0xff]
    %v395 = vld [vmem:[#allocation7 + $0x90] sm:$0xff]
    %v396 = vld [vmem:[#allocation7 + $0x98] sm:$0xff]
    %v397 = vld [vmem:[#allocation7 + $0xa0] sm:$0xff]
    %v398 = vld [vmem:[#allocation7 + $0xa8] sm:$0xff]
    %v399 = vld [vmem:[#allocation7 + $0xb0] sm:$0xff]
    %v400 = vld [vmem:[#allocation7 + $0xb8] sm:$0xff]
    %v401 = vld [vmem:[#allocation7 + $0xc0] sm:$0xff]
    %v402 = vld [vmem:[#allocation7 + $0xc8] sm:$0xff]
    %v403 = vld [vmem:[#allocation7 + $0xd0] sm:$0xff]
    %v404 = vld [vmem:[#allocation7 + $0xd8] sm:$0xff]
    %v405 = vld [vmem:[#allocation7 + $0xe0] sm:$0xff]
    %v406 = vld [vmem:[#allocation7 + $0xe8] sm:$0xff]
    %v407 = vld [vmem:[#allocation7 + $0xf0] sm:$0xff]
    %v408 = vld [vmem:[#allocation7 + $0xf8] sm:$0xff]
    %v409 = vld [vmem:[%s8] sm:$0x3]
    %v411 = vlaneseq
    %v412 = vshrl.u32 %v411, 7
    %v413 = vsub.s32 0, %v412
    %v414 = vrot.slane %v409, %v413
    %v415 = vlaneseq
    %v416 = vshrl.u32 %v415, 7
    %v417 = vsub.s32 1, %v416
    %v418 = vrot.slane %v409, %v417
    %421 = vmatprep.subr.mxu0 %v408
    %422 = vmatpush1.msra.mxu0 %v407
    %423 = vmatprep.subr.mxu0 %v406
    %424 = vmatpush1.msra.mxu0 %v405
    %425 = vmatprep.subr.mxu0 %v404
    %426 = vmatpush1.msra.mxu0 %v403
    %427 = vmatprep.subr.mxu0 %v402
    %428 = vmatpush1.msra.mxu0 %v401
    %429 = vmatprep.subr.mxu0 %v400
    %430 = vmatpush1.msra.mxu0 %v399
    %431 = vmatprep.subr.mxu0 %v398
    %432 = vmatpush1.msra.mxu0 %v397
    %433 = vmatprep.subr.mxu0 %v396
    %434 = vmatpush1.msra.mxu0 %v395
    %435 = vmatprep.subr.mxu0 %v394
    %436 = vmatpush1.msra.mxu0 %v393
    %437 = vmatprep.subr.mxu0 %v392
    %438 = vmatpush1.msra.mxu0 %v391
    %439 = vmatprep.subr.mxu0 %v390
    %440 = vmatpush1.msra.mxu0 %v389
    %441 = vmatprep.subr.mxu0 %v388
    %442 = vmatpush1.msra.mxu0 %v387
    %443 = vmatprep.subr.mxu0 %v386
    %444 = vmatpush1.msra.mxu0 %v385
    %445 = vmatprep.subr.mxu0 %v384
    %446 = vmatpush1.msra.mxu0 %v383
    %447 = vmatprep.subr.mxu0 %v382
    %448 = vmatpush1.msra.mxu0 %v381
    %449 = vmatprep.subr.mxu0 %v380
    %450 = vmatpush1.msra.mxu0 %v379
    %451 = vmatprep.subr.mxu0 %v378
    %452 = vmatpush1.msra.mxu0 %v377
    %453 = vmatprep.subr.mxu0 0.0
    %454 = vmatpush2.msra.mxu0 0.0
    %455 = vmatprep.subr.mxu0 0.0
    %456 = vmatpush2.msra.mxu0 0.0
    %457 = vmatprep.subr.mxu0 0.0
    %458 = vmatpush2.msra.mxu0 0.0
    %459 = vmatprep.subr.mxu0 0.0
    %460 = vmatpush2.msra.mxu0 0.0
    %461 = vmatprep.subr.mxu0 0.0
    %462 = vmatpush2.msra.mxu0 0.0
    %463 = vmatprep.subr.mxu0 0.0
    %464 = vmatpush2.msra.mxu0 0.0
    %465 = vmatprep.subr.mxu0 0.0
    %466 = vmatpush2.msra.mxu0 0.0
    %467 = vmatprep.subr.mxu0 0.0
    %468 = vmatpush2.msra.mxu0 0.0
    %469 = vmatprep.subr.mxu0 0.0
    %470 = vmatpush2.msra.mxu0 0.0
    %471 = vmatprep.subr.mxu0 0.0
    %472 = vmatpush2.msra.mxu0 0.0
    %473 = vmatprep.subr.mxu0 0.0
    %474 = vmatpush2.msra.mxu0 0.0
    %475 = vmatprep.subr.mxu0 0.0
    %476 = vmatpush2.msra.mxu0 0.0
    %477 = vmatprep.subr.mxu0 0.0
    %478 = vmatpush2.msra.mxu0 0.0
    %479 = vmatprep.subr.mxu0 0.0
    %480 = vmatpush2.msra.mxu0 0.0
    %481 = vmatprep.subr.mxu0 0.0
    %482 = vmatpush2.msra.mxu0 0.0
    %483 = vmatprep.subr.mxu0 0.0
    %484 = vmatpush2.msra.mxu0 0.0
    %485 = vmatprep.mubr.f32.mxu0 0.0
    %486 = vmatmul.mubr.f32.gmra.mxu0 %v376
    %v487 = vpop.f32.mrf.mxu0
    %v488 = vadd.f32 %v414, %v487
    %v489 = vpop.f32.mrf.mxu0
    %v490 = vadd.f32 %v418, %v489
    %491 = vdwg.mxu0
    %v492 = vmax.f32 %v488, 0.0
    %v493 = vmax.f32 %v490, 0.0
    %v494 = vld [vmem:[#allocation9] sm:$0xff]
    %v495 = vld [vmem:[#allocation9 + $0x8] sm:$0xff]
    %v496 = vld [vmem:[#allocation9 + $0x10] sm:$0xff]
    %v497 = vld [vmem:[#allocation9 + $0x18] sm:$0xff]
    %v498 = vld [vmem:[#allocation9 + $0x20] sm:$0xff]
    %v499 = vld [vmem:[#allocation9 + $0x28] sm:$0xff]
    %v500 = vld [vmem:[#allocation9 + $0x30] sm:$0xff]
    %v501 = vld [vmem:[#allocation9 + $0x38] sm:$0xff]
    %v502 = vld [vmem:[#allocation9 + $0x40] sm:$0xff]
    %v503 = vld [vmem:[#allocation9 + $0x48] sm:$0xff]
    %v504 = vld [vmem:[#allocation9 + $0x50] sm:$0xff]
    %v505 = vld [vmem:[#allocation9 + $0x58] sm:$0xff]
    %v506 = vld [vmem:[#allocation9 + $0x60] sm:$0xff]
    %v507 = vld [vmem:[#allocation9 + $0x68] sm:$0xff]
    %v508 = vld [vmem:[#allocation9 + $0x70] sm:$0xff]
    %v509 = vld [vmem:[#allocation9 + $0x78] sm:$0xff]
    %v510 = vld [vmem:[#allocation9 + $0x80] sm:$0xff]
    %v511 = vld [vmem:[#allocation9 + $0x88] sm:$0xff]
    %v512 = vld [vmem:[#allocation9 + $0x90] sm:$0xff]
    %v513 = vld [vmem:[#allocation9 + $0x98] sm:$0xff]
    %v514 = vld [vmem:[#allocation9 + $0xa0] sm:$0xff]
    %v515 = vld [vmem:[#allocation9 + $0xa8] sm:$0xff]
    %v516 = vld [vmem:[#allocation9 + $0xb0] sm:$0xff]
    %v517 = vld [vmem:[#allocation9 + $0xb8] sm:$0xff]
    %v518 = vld [vmem:[#allocation9 + $0xc0] sm:$0xff]
    %v519 = vld [vmem:[#allocation9 + $0xc8] sm:$0xff]
    %v520 = vld [vmem:[#allocation9 + $0xd0] sm:$0xff]
    %v521 = vld [vmem:[#allocation9 + $0xd8] sm:$0xff]
    %v522 = vld [vmem:[#allocation9 + $0xe0] sm:$0xff]
    %v523 = vld [vmem:[#allocation9 + $0xe8] sm:$0xff]
    %v524 = vld [vmem:[#allocation9 + $0xf0] sm:$0xff]
    %v525 = vld [vmem:[#allocation9 + $0xf8] sm:$0xff]
    %v526 = vld [vmem:[#allocation9 + $0x100] sm:$0xff]
    %v527 = vld [vmem:[#allocation9 + $0x108] sm:$0xff]
    %v528 = vld [vmem:[#allocation9 + $0x110] sm:$0xff]
    %v529 = vld [vmem:[#allocation9 + $0x118] sm:$0xff]
    %v530 = vld [vmem:[#allocation9 + $0x120] sm:$0xff]
    %v531 = vld [vmem:[#allocation9 + $0x128] sm:$0xff]
    %v532 = vld [vmem:[#allocation9 + $0x130] sm:$0xff]
    %v533 = vld [vmem:[#allocation9 + $0x138] sm:$0xff]
    %v534 = vld [vmem:[#allocation9 + $0x140] sm:$0xff]
    %v535 = vld [vmem:[#allocation9 + $0x148] sm:$0xff]
    %v536 = vld [vmem:[#allocation9 + $0x150] sm:$0xff]
    %v537 = vld [vmem:[#allocation9 + $0x158] sm:$0xff]
    %v538 = vld [vmem:[#allocation9 + $0x160] sm:$0xff]
    %v539 = vld [vmem:[#allocation9 + $0x168] sm:$0xff]
    %v540 = vld [vmem:[#allocation9 + $0x170] sm:$0xff]
    %v541 = vld [vmem:[#allocation9 + $0x178] sm:$0xff]
    %v542 = vld [vmem:[#allocation9 + $0x180] sm:$0xff]
    %v543 = vld [vmem:[#allocation9 + $0x188] sm:$0xff]
    %v544 = vld [vmem:[#allocation9 + $0x190] sm:$0xff]
    %v545 = vld [vmem:[#allocation9 + $0x198] sm:$0xff]
    %v546 = vld [vmem:[#allocation9 + $0x1a0] sm:$0xff]
    %v547 = vld [vmem:[#allocation9 + $0x1a8] sm:$0xff]
    %v548 = vld [vmem:[#allocation9 + $0x1b0] sm:$0xff]
    %v549 = vld [vmem:[#allocation9 + $0x1b8] sm:$0xff]
    %v550 = vld [vmem:[#allocation9 + $0x1c0] sm:$0xff]
    %v551 = vld [vmem:[#allocation9 + $0x1c8] sm:$0xff]
    %v552 = vld [vmem:[#allocation9 + $0x1d0] sm:$0xff]
    %v553 = vld [vmem:[#allocation9 + $0x1d8] sm:$0xff]
    %v554 = vld [vmem:[#allocation9 + $0x1e0] sm:$0xff]
    %v555 = vld [vmem:[#allocation9 + $0x1e8] sm:$0xff]
    %v556 = vld [vmem:[#allocation9 + $0x1f0] sm:$0xff]
    %v557 = vld [vmem:[#allocation9 + $0x1f8] sm:$0xff]
    %v558 = vld [vmem:[%s10] sm:$0x3]
    %v560 = vlaneseq
    %v561 = vshrl.u32 %v560, 7
    %v562 = vsub.s32 0, %v561
    %v563 = vrot.slane %v558, %v562
    %v564 = vlaneseq
    %v565 = vshrl.u32 %v564, 7
    %v566 = vsub.s32 1, %v565
    %v567 = vrot.slane %v558, %v566
    %570 = vmatprep.subr.mxu0 %v525
    %571 = vmatpush1.msra.mxu0 %v524
    %572 = vmatprep.subr.mxu0 %v523
    %573 = vmatpush1.msra.mxu0 %v522
    %574 = vmatprep.subr.mxu0 %v521
    %575 = vmatpush1.msra.mxu0 %v520
    %576 = vmatprep.subr.mxu0 %v519
    %577 = vmatpush1.msra.mxu0 %v518
    %578 = vmatprep.subr.mxu0 %v517
    %579 = vmatpush1.msra.mxu0 %v516
    %580 = vmatprep.subr.mxu0 %v515
    %581 = vmatpush1.msra.mxu0 %v514
    %582 = vmatprep.subr.mxu0 %v513
    %583 = vmatpush1.msra.mxu0 %v512
    %584 = vmatprep.subr.mxu0 %v511
    %585 = vmatpush1.msra.mxu0 %v510
    %586 = vmatprep.subr.mxu0 %v509
    %587 = vmatpush1.msra.mxu0 %v508
    %588 = vmatprep.subr.mxu0 %v507
    %589 = vmatpush1.msra.mxu0 %v506
    %590 = vmatprep.subr.mxu0 %v505
    %591 = vmatpush1.msra.mxu0 %v504
    %592 = vmatprep.subr.mxu0 %v503
    %593 = vmatpush1.msra.mxu0 %v502
    %594 = vmatprep.subr.mxu0 %v501
    %595 = vmatpush1.msra.mxu0 %v500
    %596 = vmatprep.subr.mxu0 %v499
    %597 = vmatpush1.msra.mxu0 %v498
    %598 = vmatprep.subr.mxu0 %v497
    %599 = vmatpush1.msra.mxu0 %v496
    %600 = vmatprep.subr.mxu0 %v495
    %601 = vmatpush1.msra.mxu0 %v494
    %602 = vmatprep.subr.mxu0 %v557
    %603 = vmatpush2.msra.mxu0 %v556
    %604 = vmatprep.subr.mxu0 %v555
    %605 = vmatpush2.msra.mxu0 %v554
    %606 = vmatprep.subr.mxu0 %v553
    %607 = vmatpush2.msra.mxu0 %v552
    %608 = vmatprep.subr.mxu0 %v551
    %609 = vmatpush2.msra.mxu0 %v550
    %610 = vmatprep.subr.mxu0 %v549
    %611 = vmatpush2.msra.mxu0 %v548
    %612 = vmatprep.subr.mxu0 %v547
    %613 = vmatpush2.msra.mxu0 %v546
    %614 = vmatprep.subr.mxu0 %v545
    %615 = vmatpush2.msra.mxu0 %v544
    %616 = vmatprep.subr.mxu0 %v543
    %617 = vmatpush2.msra.mxu0 %v542
    %618 = vmatprep.subr.mxu0 %v541
    %619 = vmatpush2.msra.mxu0 %v540
    %620 = vmatprep.subr.mxu0 %v539
    %621 = vmatpush2.msra.mxu0 %v538
    %622 = vmatprep.subr.mxu0 %v537
    %623 = vmatpush2.msra.mxu0 %v536
    %624 = vmatprep.subr.mxu0 %v535
    %625 = vmatpush2.msra.mxu0 %v534
    %626 = vmatprep.subr.mxu0 %v533
    %627 = vmatpush2.msra.mxu0 %v532
    %628 = vmatprep.subr.mxu0 %v531
    %629 = vmatpush2.msra.mxu0 %v530
    %630 = vmatprep.subr.mxu0 %v529
    %631 = vmatpush2.msra.mxu0 %v528
    %632 = vmatprep.subr.mxu0 %v527
    %633 = vmatpush2.msra.mxu0 %v526
    %634 = vmatprep.mubr.f32.mxu0 %v493
    %635 = vmatmul.mubr.f32.gmra.mxu0 %v492
    %v636 = vpop.f32.mrf.mxu0
    %v637 = vadd.f32 %v563, %v636
    %v638 = vpop.f32.mrf.mxu0
    %v639 = vadd.f32 %v567, %v638
    %640 = vdwg.mxu0
    %v641 = vsub.f32 0.0, %v637
    %v642 = vsub.f32 0.0, %v639
    %v643 = vmul.f32 %v641, 1.442695
    %v644 = vpow.pop %v643
    %v645 = vmul.f32 %v642, 1.442695
    %v646 = vpow.pop %v645
    %v647 = vadd.f32 %v644, 1.0
    %v648 = vadd.f32 %v646, 1.0
    %v649 = vrcp.pop %v647
    %v650 = vrcp.pop %v648
    %v653 = vcombine.low %v649, %v650
    %v655 = vunpack.c.l.s4 1983009808
    %v656 = vunpack.c.0.s8 %v655
    %v657 = vlaneseq
    %v658 = vshrl.u32 %v657, 7
    %v659 = vsub.s32 %v656, %v658
    %v660 = vrot.slane %v653, %v659
    %662 = vst [vmem:[%s11] sm:$0xf] %v660
    // Predicated region
    $region66: #{decoder_forward.1} parent=1 // pred_check
      _
    $region67: #{decoder_forward.1} parent=1 // pred_check_branch
      %664 = sbr.rel (0) target = $region69
    $region68: #{decoder_forward.1} parent=1 // pred_region
      _
    $region69: #{decoder_forward.1} parent=1 // pred_fallthru
      _
    // Predicated region
    $region70: #{decoder_forward.1} parent=1 // pred_check
      _
    $region71: #{decoder_forward.1} parent=1 // pred_check_branch
      %666 = sbr.rel (0) target = $region73
    $region72: #{decoder_forward.1} parent=1 // pred_region
      _
    $region73: #{decoder_forward.1} parent=1 // pred_fallthru
      _
    %667 = vsyncpa [#allocation3], 1
    %668 = vsyncpa [#allocation5], 1
    %669 = vsyncpa [#allocation8], 1

</llo_original>
